<compile_context>
chip_gen: v6e
topology: v6e:2x2x1
jax: 0.10.0
libtpu: 0.0.40
codegen_flags: <defaults>
</compile_context>

<pallas_src>
import math
from functools import partial

import jax
import jax.numpy as jnp
from jax import lax
from jax.experimental import pallas as pl
from jax.experimental.pallas import tpu as pltpu


def _maxpool_kernel(x_ref, o_ref, tbuf_ref, *, kernel_size, stride):
    """x_ref: (Bc, Th, Wp)   o_ref: (Bc, Tho, Wo)   tbuf_ref: (Bc, Wp, Tho)."""
    bc = x_ref.shape[0]
    _, tho, wo = o_ref.shape

    # ---- pool along H (sublane axis): k strided loads, k-1 maxima (VPU) ----
    rmax = x_ref[:, pl.ds(0, tho, stride=stride), :]              # (Bc, Tho, Wp)
    for dh in range(1, kernel_size):
        rmax = jnp.maximum(rmax, x_ref[:, pl.ds(dh, tho, stride=stride), :])

    # ---- pool along W (lane axis) ------------------------------------------
    # Lane-strided loads are not supported, so move W onto the sublane axis
    # with per-plane 2-D transposes through VMEM scratch and reuse the same
    # sublane-strided-load trick.  Intermediates stay O(tile).
    for i in range(bc):                                           # static unroll
        tbuf_ref[i] = rmax[i].T                                   # (Wp, Tho)

    cmax = tbuf_ref[:, pl.ds(0, wo, stride=stride), :]            # (Bc, Wo, Tho)
    for dw in range(1, kernel_size):
        cmax = jnp.maximum(cmax, tbuf_ref[:, pl.ds(dw, wo, stride=stride), :])

    for i in range(bc):
        o_ref[i] = cmax[i].T.astype(o_ref.dtype)                  # (Tho, Wo)


def _same_pads(d2, d3, kernel_size, stride):
    # Faithful reproduction of MaxPoolSame._maxPool2dSame, including its
    # swapped use of the "width"/"height" pads in the MaxPool2d padding tuple
    # and the //2 truncation of odd pad amounts.  Part of the module semantics.
    out_d2 = math.ceil(float(d2) / float(stride))
    out_d3 = math.ceil(float(d3) / float(stride))
    pad_along_d2 = max((out_d2 - 1) * stride + kernel_size - d2, 0)  # "padAlongWidth"
    pad_along_d3 = max((out_d3 - 1) * stride + kernel_size - d3, 0)  # "padAlongHeight"
    pad_d2 = pad_along_d3 // 2   # PyTorch pad[0] -> applied to dim 2
    pad_d3 = pad_along_d2 // 2   # PyTorch pad[1] -> applied to dim 3
    return pad_d2, pad_d3


def _largest_divisor_leq(n, cap):
    cap = max(1, min(cap, n))
    for d in range(cap, 0, -1):
        if n % d == 0:
            return d
    return 1


def _pick_tiles(b, hp, ho, wp, itemsize, kernel_size, stride):
    """Choose (Bc planes/block, Th in-rows/block, Tho out-rows/block, grid_h)."""
    budget = 4 * 1024 * 1024   # target input bytes per block: double-buffered
                               # in+out+scratch stays well under VMEM limits on
                               # v5e (16M scoped) / v6e / v7x (64M physical).
    sub = {4: 8, 2: 16, 1: 32}.get(itemsize, 8)   # sublane tiling multiple

    # H tiling only when windows don't overlap (k == s): blocks then tile the
    # input exactly and sublane dims stay tile-aligned.
    th, tho, gh = hp, ho, 1
    if kernel_size == stride:
        row_bytes = wp * itemsize * stride            # input bytes per out row
        cap = (budget // max(row_bytes, 1)) // sub * sub
        best = 0
        for cand in range(sub, min(ho, cap) + 1, sub):
            if ho % cand == 0:
                best = cand
        if best and best < ho:
            tho, th, gh = best, best * stride, ho // best

    # Channel batching: planes per block (amortize per-step overhead, big DMAs).
    slab = th * wp * itemsize
    bc = _largest_divisor_leq(b, max(1, budget // max(slab, 1)))
    # Keep >= 2 grid steps when possible so v7x's two TensorCores both get work.
    if b >= 2 and (b // bc) * gh < 2:
        bc = _largest_divisor_leq(b, max(1, bc // 2))
    return bc, th, tho, gh


def max_pool_same(x, kernel_size=2, stride=2):
    n, c, d2, d3 = x.shape
    pad_d2, pad_d3 = _same_pads(d2, d3, kernel_size, stride)
    if pad_d2 or pad_d3:
        # Rare (k > stride).  Pad with the dtype's own finite minimum so
        # integer inputs work too; for the default k == stride == 2 the pads
        # are always zero and no extra HBM pass is paid.
        if jnp.issubdtype(x.dtype, jnp.floating):
            pad_val = jnp.finfo(x.dtype).min
        else:
            pad_val = jnp.iinfo(x.dtype).min
        x = jnp.pad(x, ((0, 0), (0, 0), (pad_d2, pad_d2), (pad_d3, pad_d3)),
                    mode="constant", constant_values=pad_val)
    hp, wp = d2 + 2 * pad_d2, d3 + 2 * pad_d3
    # PyTorch MaxPool2d default ceil_mode=False -> floor output sizes.
    ho = (hp - kernel_size) // stride + 1
    wo = (wp - kernel_size) // stride + 1
    b = n * c
    xb = x.reshape(b, hp, wp)

    bc, th, tho, gh = _pick_tiles(b, hp, ho, wp, x.dtype.itemsize,
                                  kernel_size, stride)

    out = pl.pallas_call(
        partial(_maxpool_kernel, kernel_size=kernel_size, stride=stride),
        out_shape=jax.ShapeDtypeStruct((b, ho, wo), x.dtype),
        grid_spec=pltpu.PrefetchScalarGridSpec(
            num_scalar_prefetch=0,
            grid=(b // bc, gh),
            in_specs=[pl.BlockSpec((bc, th, wp), lambda ib, ih: (ib, ih, 0))],
            out_specs=pl.BlockSpec((bc, tho, wo), lambda ib, ih: (ib, ih, 0)),
            scratch_shapes=[pltpu.VMEM((bc, wp, tho), x.dtype)],
        ),
        compiler_params=pltpu.CompilerParams(
            dimension_semantics=("parallel", "parallel"),
            vmem_limit_bytes=48 * 1024 * 1024,
        ),
    )(xb)
    return out.reshape(n, c, ho, wo)


def _reference(x, kernel_size=2, stride=2):
    pad_d2, pad_d3 = _same_pads(x.shape[2], x.shape[3], kernel_size, stride)
    return lax.reduce_window(
        x, -jnp.inf, lax.max,
        window_dimensions=(1, 1, kernel_size, kernel_size),
        window_strides=(1, 1, stride, stride),
        padding=((0, 0), (0, 0), (pad_d2, pad_d2), (pad_d3, pad_d3)),
    )


if __name__ == "__main__":
    key = jax.random.PRNGKey(0)
    x = jax.random.normal(key, (2, 4, 16, 16), dtype=jnp.float32)

    y = max_pool_same(x, kernel_size=2, stride=2)
    jax.block_until_ready(y)

    y_ref = _reference(x, kernel_size=2, stride=2)
    assert y.shape == y_ref.shape == (2, 4, 8, 8), (y.shape, y_ref.shape)
    assert jnp.allclose(y, y_ref), "Pallas maxpool mismatch vs reduce_window reference"

    print("KERNEL_OK")
</pallas_src>

<mosaic_0001>
module attributes {stable_mosaic.version = 11 : i64} {
  func.func @_maxpool_kernel(%arg0: i32, %arg1: i32, %arg2: memref<4x16x16xf32, #tpu.memory_space<vmem>>, %arg3: memref<4x8x8xf32, #tpu.memory_space<vmem>>, %arg4: memref<4x16x8xf32, #tpu.memory_space<vmem>>) attributes {dimension_semantics = [#tpu.dimension_semantics<parallel>, #tpu.dimension_semantics<parallel>], iteration_bounds = array<i64: 2, 1>, scalar_prefetch = 0 : i64, scratch_operands = 1 : i64, tpu.core_type = #tpu.core_type<tc>, window_params = [{transform_indices = @transform_0, window_bounds = array<i64: 4, 16, 16>}, {transform_indices = @transform_1, window_bounds = array<i64: 4, 8, 8>}]} {
    %c0 = arith.constant 0 : index
    %c0_0 = arith.constant 0 : index
    %c0_1 = arith.constant 0 : index
    %0 = tpu.strided_load %arg2[%c0, %c0_0, %c0_1] {strides = array<i32: 1, 2, 1>} : memref<4x16x16xf32, #tpu.memory_space<vmem>>, vector<4x8x16xf32>
    %c0_2 = arith.constant 0 : index
    %c1 = arith.constant 1 : index
    %c0_3 = arith.constant 0 : index
    %1 = tpu.strided_load %arg2[%c0_2, %c1, %c0_3] {strides = array<i32: 1, 2, 1>} : memref<4x16x16xf32, #tpu.memory_space<vmem>>, vector<4x8x16xf32>
    %2 = arith.maximumf %0, %1 : vector<4x8x16xf32>
    %3 = vector.extract_strided_slice %2 {offsets = [0, 0, 0], sizes = [1, 8, 16], strides = [1, 1, 1]} : vector<4x8x16xf32> to vector<1x8x16xf32>
    %4 = vector.shape_cast %3 : vector<1x8x16xf32> to vector<8x16xf32>
    %5 = tpu.transpose %4, [1, 0] : vector<8x16xf32> -> vector<16x8xf32>
    %c0_4 = arith.constant 0 : index
    %c0_5 = arith.constant 0 : index
    %c0_6 = arith.constant 0 : index
    %6 = vector.load %arg4[%c0_4, %c0_5, %c0_6] : memref<4x16x8xf32, #tpu.memory_space<vmem>>, vector<1x16x8xf32>
    %7 = vector.shape_cast %6 : vector<1x16x8xf32> to vector<16x8xf32>
    %8 = vector.shape_cast %5 : vector<16x8xf32> to vector<1x16x8xf32>
    tpu.vector_store %arg4[%c0_4, %c0_5, %c0_6], %8 {strides = array<i32>} : memref<4x16x8xf32, #tpu.memory_space<vmem>>, vector<1x16x8xf32>,
    %9 = vector.extract_strided_slice %2 {offsets = [1, 0, 0], sizes = [1, 8, 16], strides = [1, 1, 1]} : vector<4x8x16xf32> to vector<1x8x16xf32>
    %10 = vector.shape_cast %9 : vector<1x8x16xf32> to vector<8x16xf32>
    %11 = tpu.transpose %10, [1, 0] : vector<8x16xf32> -> vector<16x8xf32>
    %c1_7 = arith.constant 1 : index
    %c0_8 = arith.constant 0 : index
    %c0_9 = arith.constant 0 : index
    %12 = vector.load %arg4[%c1_7, %c0_8, %c0_9] : memref<4x16x8xf32, #tpu.memory_space<vmem>>, vector<1x16x8xf32>
    %13 = vector.shape_cast %12 : vector<1x16x8xf32> to vector<16x8xf32>
    %14 = vector.shape_cast %11 : vector<16x8xf32> to vector<1x16x8xf32>
    tpu.vector_store %arg4[%c1_7, %c0_8, %c0_9], %14 {strides = array<i32>} : memref<4x16x8xf32, #tpu.memory_space<vmem>>, vector<1x16x8xf32>,
    %15 = vector.extract_strided_slice %2 {offsets = [2, 0, 0], sizes = [1, 8, 16], strides = [1, 1, 1]} : vector<4x8x16xf32> to vector<1x8x16xf32>
    %16 = vector.shape_cast %15 : vector<1x8x16xf32> to vector<8x16xf32>
    %17 = tpu.transpose %16, [1, 0] : vector<8x16xf32> -> vector<16x8xf32>
    %c2 = arith.constant 2 : index
    %c0_10 = arith.constant 0 : index
    %c0_11 = arith.constant 0 : index
    %18 = vector.load %arg4[%c2, %c0_10, %c0_11] : memref<4x16x8xf32, #tpu.memory_space<vmem>>, vector<1x16x8xf32>
    %19 = vector.shape_cast %18 : vector<1x16x8xf32> to vector<16x8xf32>
    %20 = vector.shape_cast %17 : vector<16x8xf32> to vector<1x16x8xf32>
    tpu.vector_store %arg4[%c2, %c0_10, %c0_11], %20 {strides = array<i32>} : memref<4x16x8xf32, #tpu.memory_space<vmem>>, vector<1x16x8xf32>,
    %21 = vector.extract_strided_slice %2 {offsets = [3, 0, 0], sizes = [1, 8, 16], strides = [1, 1, 1]} : vector<4x8x16xf32> to vector<1x8x16xf32>
    %22 = vector.shape_cast %21 : vector<1x8x16xf32> to vector<8x16xf32>
    %23 = tpu.transpose %22, [1, 0] : vector<8x16xf32> -> vector<16x8xf32>
    %c3 = arith.constant 3 : index
    %c0_12 = arith.constant 0 : index
    %c0_13 = arith.constant 0 : index
    %24 = vector.load %arg4[%c3, %c0_12, %c0_13] : memref<4x16x8xf32, #tpu.memory_space<vmem>>, vector<1x16x8xf32>
    %25 = vector.shape_cast %24 : vector<1x16x8xf32> to vector<16x8xf32>
    %26 = vector.shape_cast %23 : vector<16x8xf32> to vector<1x16x8xf32>
    tpu.vector_store %arg4[%c3, %c0_12, %c0_13], %26 {strides = array<i32>} : memref<4x16x8xf32, #tpu.memory_space<vmem>>, vector<1x16x8xf32>,
    %c0_14 = arith.constant 0 : index
    %c0_15 = arith.constant 0 : index
    %c0_16 = arith.constant 0 : index
    %27 = tpu.strided_load %arg4[%c0_14, %c0_15, %c0_16] {strides = array<i32: 1, 2, 1>} : memref<4x16x8xf32, #tpu.memory_space<vmem>>, vector<4x8x8xf32>
    %c0_17 = arith.constant 0 : index
    %c1_18 = arith.constant 1 : index
    %c0_19 = arith.constant 0 : index
    %28 = tpu.strided_load %arg4[%c0_17, %c1_18, %c0_19] {strides = array<i32: 1, 2, 1>} : memref<4x16x8xf32, #tpu.memory_space<vmem>>, vector<4x8x8xf32>
    %29 = arith.maximumf %27, %28 : vector<4x8x8xf32>
    %30 = vector.extract_strided_slice %29 {offsets = [0, 0, 0], sizes = [1, 8, 8], strides = [1, 1, 1]} : vector<4x8x8xf32> to vector<1x8x8xf32>
    %31 = vector.shape_cast %30 : vector<1x8x8xf32> to vector<8x8xf32>
    %32 = tpu.transpose %31, [1, 0] : vector<8x8xf32> -> vector<8x8xf32>
    %c0_20 = arith.constant 0 : index
    %c0_21 = arith.constant 0 : index
    %c0_22 = arith.constant 0 : index
    %33 = vector.load %arg3[%c0_20, %c0_21, %c0_22] : memref<4x8x8xf32, #tpu.memory_space<vmem>>, vector<1x8x8xf32>
    %34 = vector.shape_cast %33 : vector<1x8x8xf32> to vector<8x8xf32>
    %35 = vector.shape_cast %32 : vector<8x8xf32> to vector<1x8x8xf32>
    tpu.vector_store %arg3[%c0_20, %c0_21, %c0_22], %35 {strides = array<i32>} : memref<4x8x8xf32, #tpu.memory_space<vmem>>, vector<1x8x8xf32>,
    %36 = vector.extract_strided_slice %29 {offsets = [1, 0, 0], sizes = [1, 8, 8], strides = [1, 1, 1]} : vector<4x8x8xf32> to vector<1x8x8xf32>
    %37 = vector.shape_cast %36 : vector<1x8x8xf32> to vector<8x8xf32>
    %38 = tpu.transpose %37, [1, 0] : vector<8x8xf32> -> vector<8x8xf32>
    %c1_23 = arith.constant 1 : index
    %c0_24 = arith.constant 0 : index
    %c0_25 = arith.constant 0 : index
    %39 = vector.load %arg3[%c1_23, %c0_24, %c0_25] : memref<4x8x8xf32, #tpu.memory_space<vmem>>, vector<1x8x8xf32>
    %40 = vector.shape_cast %39 : vector<1x8x8xf32> to vector<8x8xf32>
    %41 = vector.shape_cast %38 : vector<8x8xf32> to vector<1x8x8xf32>
    tpu.vector_store %arg3[%c1_23, %c0_24, %c0_25], %41 {strides = array<i32>} : memref<4x8x8xf32, #tpu.memory_space<vmem>>, vector<1x8x8xf32>,
    %42 = vector.extract_strided_slice %29 {offsets = [2, 0, 0], sizes = [1, 8, 8], strides = [1, 1, 1]} : vector<4x8x8xf32> to vector<1x8x8xf32>
    %43 = vector.shape_cast %42 : vector<1x8x8xf32> to vector<8x8xf32>
    %44 = tpu.transpose %43, [1, 0] : vector<8x8xf32> -> vector<8x8xf32>
    %c2_26 = arith.constant 2 : index
    %c0_27 = arith.constant 0 : index
    %c0_28 = arith.constant 0 : index
    %45 = vector.load %arg3[%c2_26, %c0_27, %c0_28] : memref<4x8x8xf32, #tpu.memory_space<vmem>>, vector<1x8x8xf32>
    %46 = vector.shape_cast %45 : vector<1x8x8xf32> to vector<8x8xf32>
    %47 = vector.shape_cast %44 : vector<8x8xf32> to vector<1x8x8xf32>
    tpu.vector_store %arg3[%c2_26, %c0_27, %c0_28], %47 {strides = array<i32>} : memref<4x8x8xf32, #tpu.memory_space<vmem>>, vector<1x8x8xf32>,
    %48 = vector.extract_strided_slice %29 {offsets = [3, 0, 0], sizes = [1, 8, 8], strides = [1, 1, 1]} : vector<4x8x8xf32> to vector<1x8x8xf32>
    %49 = vector.shape_cast %48 : vector<1x8x8xf32> to vector<8x8xf32>
    %50 = tpu.transpose %49, [1, 0] : vector<8x8xf32> -> vector<8x8xf32>
    %c3_29 = arith.constant 3 : index
    %c0_30 = arith.constant 0 : index
    %c0_31 = arith.constant 0 : index
    %51 = vector.load %arg3[%c3_29, %c0_30, %c0_31] : memref<4x8x8xf32, #tpu.memory_space<vmem>>, vector<1x8x8xf32>
    %52 = vector.shape_cast %51 : vector<1x8x8xf32> to vector<8x8xf32>
    %53 = vector.shape_cast %50 : vector<8x8xf32> to vector<1x8x8xf32>
    tpu.vector_store %arg3[%c3_29, %c0_30, %c0_31], %53 {strides = array<i32>} : memref<4x8x8xf32, #tpu.memory_space<vmem>>, vector<1x8x8xf32>,
    return
  }
  func.func @transform_0(%arg0: i32, %arg1: i32) -> (i32, i32, i32) {
    %c0_i32 = arith.constant 0 : i32
    %c0_i32_0 = arith.constant 0 : i32
    return %arg0, %arg1, %c0_i32 : i32, i32, i32
  }
  func.func @transform_1(%arg0: i32, %arg1: i32) -> (i32, i32, i32) {
    %c0_i32 = arith.constant 0 : i32
    %c0_i32_0 = arith.constant 0 : i32
    return %arg0, %arg1, %c0_i32 : i32, i32, i32
  }
}

</mosaic_0001>

<llo_original>
// kernel: tpu_custom_call.1
$region0: #{tpu_custom_call.1}
  #allocation0 [shape = 'u32[]', space=smem, size = 0x4, offset = 0x4, fixed_abs, tag = 'smem constant byte address 0x4 - core index']
  #allocation1 [shape = 'u32[144,128]{1,0:T(1,128)}', space=vmem, size = 0x12000, scoped, tag = 'internal scratch']
  #allocation2 [shape = 'f32[4,16,8]{2,1,0:T(8,128)}', space=vmem, size = 0x8000, scoped, tag = 'scratch operand']
  %s0 = inlined_call_operand.hbm [shape: f32[8,16,16], index: 0, kind: input, shape index: {}]
  %s1 = inlined_call_operand.hbm [shape: f32[8,8,8], index: 1, kind: output, shape index: {}]
  %s2 = sld [smem:[#allocation0]]
  $region41: #{tpu_custom_call.1} parent=0
    _
  %s4 = ssub.s32 1, %s2
  %s5 = scalar_select 0, %s4, %s2
  $region1: #{tpu_custom_call.1} parent=0
    #allocation3 [shape = 'u8[65536]{0}', space=vmem, size = 0x10000, scoped, tag = 'input window, operand 0']
    #allocation4 [shape = 's32[2]{0}', space=sflag, size = 0x8, scoped, tag = 'scoped memory for tpu_custom_call.1']
    #allocation5 [shape = 's32[2]{0}', space=sflag, size = 0x8, scoped, tag = 'scoped memory for tpu_custom_call.1']
    #allocation6 [shape = 'u8[32768]{0}', space=vmem, size = 0x8000, scoped, tag = 'output window, operand 0']
    %6 = vsyncpa [#allocation4], 0
    %s7 = scalar_lea.sflag [#allocation4], 1
    %8 = vsyncpa %s7, 0
    %9 = vsyncpa [#allocation5], 0
    %s10 = scalar_lea.sflag [#allocation5], 1
    %11 = vsyncpa %s10, 0
    loop: start=0, step=1, limit=4
    $region2: #{tpu_custom_call.1} parent=1 // loop_pre_header
      _
    $region3: #{tpu_custom_call.1} parent=1 // loop_header
      %s13 = sphi 0, %s17
      %p14 = scmp.ge.s32.totalorder %s13, 4
      %s20 = sphi 0, %s32
      %s21 = sphi 0, %s28
      %s22 = sphi 0, %s20
      %s23 = sphi 0, %s21
      %s24 = sphi 0, %s22
      %s25 = sphi 0, %s23
      %s37 = sphi 0, %s39
      %s40 = sphi 0, %s37
      %s41 = sphi 0, %s40
      %s57 = sphi 0, %s41
      %s65 = sphi 0, %s67
      %s68 = sphi 0, %s65
      %s69 = sphi 0, %s68
      %s85 = sphi 0, %s69
    $region4: #{tpu_custom_call.1} parent=1 // loop_header_branch
      %16 = sbr.rel (%p14) target = $region8
    $region5: #{tpu_custom_call.1} parent=1 // loop_body
      %s18 = ssub.s32 %s13, 1
      %s19 = ssub.s32 %s13, 2
      %s26 = sadd.s32 1, %s21
      %p27 = scmp.ge.s32.totalorder %s26, 1
      %s28 = scalar_select %p27, 0, %s26
      %s29 = sadd.s32 1, %s20
      %s30 = scalar_select %p27, %s29, %s20
      %p31 = scmp.ge.s32.totalorder %s30, 2
      %s32 = scalar_select %p31, 0, %s30
      %s33 = ssub.s32 %s20, %s32
      %s34 = ssub.s32 %s21, %s28
      %s35 = sor.u32 %s33, %s34
      %p36 = scmp.eq.s32.totalorder %s35, 0
      %s38 = sadd.s32 %s37, 1
      %s39 = scalar_select %p36, %s37, %s38
      %p42 = pneg %p36
      %p43 = scmp.eq.s32.totalorder %s13, 1
      %p44 = por %p42, %p43
      %p45 = scmp.ne.s32.totalorder %s37, %s40
      %p46 = scmp.eq.s32.totalorder %s13, 0
      %p47 = por %p45, %p46
      %p48 = scmp.ne.s32.totalorder %s37, %s40
      %p49 = scmp.eq.s32.totalorder %s18, 1
      %p50 = por %p48, %p49
      %p51 = scmp.ne.s32.totalorder %s40, %s41
      %p52 = scmp.eq.s32.totalorder %s18, 0
      %p53 = por %p51, %p52
      %p54 = scmp.ne.s32.totalorder %s40, %s41
      %p55 = scmp.eq.s32.totalorder %s19, 1
      %p56 = por %p54, %p55
      %p58 = scmp.ne.s32.totalorder %s41, %s57
      %p59 = scmp.eq.s32.totalorder %s19, 0
      %p60 = por %p58, %p59
      %s61 = ssub.s32 %s20, %s32
      %s62 = ssub.s32 %s21, %s28
      %s63 = sor.u32 %s61, %s62
      %p64 = scmp.eq.s32.totalorder %s63, 0
      %s66 = sadd.s32 %s65, 1
      %s67 = scalar_select %p64, %s65, %s66
      %p70 = pneg %p64
      %p71 = scmp.eq.s32.totalorder %s13, 1
      %p72 = por %p70, %p71
      %p73 = scmp.ne.s32.totalorder %s65, %s68
      %p74 = scmp.eq.s32.totalorder %s13, 0
      %p75 = por %p73, %p74
      %p76 = scmp.ne.s32.totalorder %s65, %s68
      %p77 = scmp.eq.s32.totalorder %s18, 1
      %p78 = por %p76, %p77
      %p79 = scmp.ne.s32.totalorder %s68, %s69
      %p80 = scmp.eq.s32.totalorder %s18, 0
      %p81 = por %p79, %p80
      %p82 = scmp.ne.s32.totalorder %s68, %s69
      %p83 = scmp.eq.s32.totalorder %s19, 1
      %p84 = por %p82, %p83
      %p86 = scmp.ne.s32.totalorder %s69, %s85
      %p87 = scmp.eq.s32.totalorder %s19, 0
      %p88 = por %p86, %p87
      %p89 = scmp.le.s32.totalorder 1, %s13
      %p90 = scmp.lt.s32.totalorder %s13, 3
      %p91 = pnand %p89, %p90
      %p92 = pneg %p91
      // Predicated region
      $region9: #{tpu_custom_call.1} parent=5 // pred_check
        _
      $region10: #{tpu_custom_call.1} parent=5 // pred_check_branch
        %94 = sbr.rel (%p91) target = $region12
      $region11: #{tpu_custom_call.1} parent=5 // pred_region
        %s95 = ssub.s32 %s13, 1
      $region12: #{tpu_custom_call.1} parent=5 // pred_fallthru
        _
      %p96 = scmp.lt.s32.totalorder %s13, 2
      // Predicated region
      $region13: #{tpu_custom_call.1} parent=5 // pred_check
        %p97 = pneg %p96
      $region14: #{tpu_custom_call.1} parent=5 // pred_check_branch
        %99 = sbr.rel (%p97) target = $region16
      $region15: #{tpu_custom_call.1} parent=5 // pred_region
        // Predicated region
        $region17: #{tpu_custom_call.1} parent=15 // pred_check
          %p100 = pneg %p47
        $region18: #{tpu_custom_call.1} parent=15 // pred_check_branch
          %102 = sbr.rel (%p100) target = $region20
        $region19: #{tpu_custom_call.1} parent=15 // pred_region
          %s103 = sand.u32 %s37, 1
          %s104 = scalar_lea.sflag [#allocation4], %s103
          %s105 = sand.u32 %s37, 1
          %s106 = smul.addr %s105, 64
          %s107 = scalar_lea.vmem [#allocation3], %s106
          %s108 = smul.u32 4, %s20
          %s109 = smul.u32 2, %s21
          %s111 = ssub.s32 1024, 1024
          %112 = vsyncadd %s104, %s111
          %s113 = smul.addr %s108, 2
          %s114 = sadd.s32 %s109, %s113
          %s115 = smul.addr %s114, 128
          %s116 = scalar_lea.hbm %s0, %s115
          %s117 = sshll.u32 %s107, 4
          %s118 = int_to_ptr.vmem [resolvable:$true] %s117
          %123 = dma.hbm_to_vmem [thread:$0]  %s116, 1024, %s118, %s104, 128, 128, 8
        $region20: #{tpu_custom_call.1} parent=15 // pred_fallthru
          _
      $region16: #{tpu_custom_call.1} parent=5 // pred_fallthru
        _
      %p124 = scmp.le.s32.totalorder 1, %s13
      %p125 = scmp.lt.s32.totalorder %s13, 3
      %p126 = pnand %p124, %p125
      %p127 = pneg %p126
      // Predicated region
      $region21: #{tpu_custom_call.1} parent=5 // pred_check
        _
      $region22: #{tpu_custom_call.1} parent=5 // pred_check_branch
        %129 = sbr.rel (%p126) target = $region24
      $region23: #{tpu_custom_call.1} parent=5 // pred_region
        %s130 = ssub.s32 %s13, 1
        %s131 = sand.u32 %s40, 1
        %s132 = scalar_lea.sflag [#allocation4], %s131
        %s133 = sand.u32 %s40, 1
        %s134 = smul.addr %s133, 64
        %s135 = scalar_lea.vmem [#allocation3], %s134
        // Predicated region
        $region25: #{tpu_custom_call.1} parent=23 // pred_check
          %p136 = pneg %p53
        $region26: #{tpu_custom_call.1} parent=23 // pred_check_branch
          %138 = sbr.rel (%p136) target = $region28
        $region27: #{tpu_custom_call.1} parent=23 // pred_region
          %139 = dma.done %s132, 1024
        $region28: #{tpu_custom_call.1} parent=23 // pred_fallthru
          _
        %s140 = sand.u32 %s40, 1
        %s141 = scalar_lea.sflag [#allocation4], %s140
        %s142 = sand.u32 %s40, 1
        %s143 = smul.addr %s142, 64
        %s144 = scalar_lea.vmem [#allocation3], %s143
        %p145 = pneg %p53
        %p146 = pneg %p50
        %p147 = pneg %p81
        %p148 = pneg %p78
        %s149 = sand.u32 %s68, 1
        %s150 = scalar_lea.sflag [#allocation5], %s149
        %s151 = sand.u32 %s68, 1
        %s152 = smul.addr %s151, 32
        %s153 = scalar_lea.vmem [#allocation6], %s152
        %s154 = smul.u32 4, %s22
        %s155 = smul.u32 2, %s23
        %s156 = smul.u32 4, %s22
        %v157 = vld [vmem:[%s135] ss:$2 sm:$0xff]
        %s158 = scalar_lea.vmem %s135, 16 [#allocation3]
        %v159 = vld [vmem:[%s158] ss:$2 sm:$0xff]
        %s160 = scalar_lea.vmem %s135, 32 [#allocation3]
        %v161 = vld [vmem:[%s160] ss:$2 sm:$0xff]
        %s162 = scalar_lea.vmem %s135, 48 [#allocation3]
        %v163 = vld [vmem:[%s162] ss:$2 sm:$0xff]
        %s164 = scalar_lea.vmem %s135, 1 [#allocation3]
        %v165 = vld [vmem:[%s164] ss:$2 sm:$0xff]
        %s166 = scalar_lea.vmem %s135, 17 [#allocation3]
        %v167 = vld [vmem:[%s166] ss:$2 sm:$0xff]
        %s168 = scalar_lea.vmem %s135, 33 [#allocation3]
        %v169 = vld [vmem:[%s168] ss:$2 sm:$0xff]
        %s170 = scalar_lea.vmem %s135, 49 [#allocation3]
        %v171 = vld [vmem:[%s170] ss:$2 sm:$0xff]
        %v172 = vmax.f32 %v157, %v165
        %v173 = vmax.f32 %v159, %v167
        %v174 = vmax.f32 %v161, %v169
        %v175 = vmax.f32 %v163, %v171
        %176 = vxpose.xlu0.b32.start [1/16] %v172, 128
        %177 = vxpose.xlu0.b32.cont [2/16] 0.0, 128
        %178 = vxpose.xlu0.b32.cont [3/16] 0.0, 128
        %179 = vxpose.xlu0.b32.cont [4/16] 0.0, 128
        %180 = vxpose.xlu0.b32.cont [5/16] 0.0, 128
        %181 = vxpose.xlu0.b32.cont [6/16] 0.0, 128
        %182 = vxpose.xlu0.b32.cont [7/16] 0.0, 128
        %183 = vxpose.xlu0.b32.cont [8/16] 0.0, 128
        %184 = vxpose.xlu0.b32.cont [9/16] 0.0, 128
        %185 = vxpose.xlu0.b32.cont [10/16] 0.0, 128
        %186 = vxpose.xlu0.b32.cont [11/16] 0.0, 128
        %187 = vxpose.xlu0.b32.cont [12/16] 0.0, 128
        %188 = vxpose.xlu0.b32.cont [13/16] 0.0, 128
        %189 = vxpose.xlu0.b32.cont [14/16] 0.0, 128
        %190 = vxpose.xlu0.b32.cont [15/16] 0.0, 128
        %191 = vxpose.xlu0.b32.end [16/16] 0.0, 128
        %v192 = vpop.trf.xlu0
        %v193 = vpop.trf.xlu0
        %v194 = vpop.trf.xlu0
        %v195 = vpop.trf.xlu0
        %v196 = vpop.trf.xlu0
        %v197 = vpop.trf.xlu0
        %v198 = vpop.trf.xlu0
        %v199 = vpop.trf.xlu0
        %v200 = vpop.trf.xlu0
        %v201 = vpop.trf.xlu0
        %v202 = vpop.trf.xlu0
        %v203 = vpop.trf.xlu0
        %v204 = vpop.trf.xlu0
        %v205 = vpop.trf.xlu0
        %v206 = vpop.trf.xlu0
        %v207 = vpop.trf.xlu0
        %vm208 = vcmask 64512
        %209 = vst.msk [vmem:[#allocation2] sm:$0xff] %vm208, %v192
        %210 = vst.msk [vmem:[#allocation2 + $0x8] sm:$0xff] %vm208, %v193
        %211 = vxpose.xlu0.b32.start [1/16] %v173, 128
        %212 = vxpose.xlu0.b32.cont [2/16] 0.0, 128
        %213 = vxpose.xlu0.b32.cont [3/16] 0.0, 128
        %214 = vxpose.xlu0.b32.cont [4/16] 0.0, 128
        %215 = vxpose.xlu0.b32.cont [5/16] 0.0, 128
        %216 = vxpose.xlu0.b32.cont [6/16] 0.0, 128
        %217 = vxpose.xlu0.b32.cont [7/16] 0.0, 128
        %218 = vxpose.xlu0.b32.cont [8/16] 0.0, 128
        %219 = vxpose.xlu0.b32.cont [9/16] 0.0, 128
        %220 = vxpose.xlu0.b32.cont [10/16] 0.0, 128
        %221 = vxpose.xlu0.b32.cont [11/16] 0.0, 128
        %222 = vxpose.xlu0.b32.cont [12/16] 0.0, 128
        %223 = vxpose.xlu0.b32.cont [13/16] 0.0, 128
        %224 = vxpose.xlu0.b32.cont [14/16] 0.0, 128
        %225 = vxpose.xlu0.b32.cont [15/16] 0.0, 128
        %226 = vxpose.xlu0.b32.end [16/16] 0.0, 128
        %v227 = vpop.trf.xlu0
        %v228 = vpop.trf.xlu0
        %v229 = vpop.trf.xlu0
        %v230 = vpop.trf.xlu0
        %v231 = vpop.trf.xlu0
        %v232 = vpop.trf.xlu0
        %v233 = vpop.trf.xlu0
        %v234 = vpop.trf.xlu0
        %v235 = vpop.trf.xlu0
        %v236 = vpop.trf.xlu0
        %v237 = vpop.trf.xlu0
        %v238 = vpop.trf.xlu0
        %v239 = vpop.trf.xlu0
        %v240 = vpop.trf.xlu0
        %v241 = vpop.trf.xlu0
        %v242 = vpop.trf.xlu0
        %s243 = scalar_lea.vmem [#allocation2], 16
        %244 = vst.msk [vmem:[%s243] sm:$0xff] %vm208, %v227
        %245 = vst.msk [vmem:[%s243 + $0x8] sm:$0xff] %vm208, %v228
        %246 = vxpose.xlu0.b32.start [1/16] %v174, 128
        %247 = vxpose.xlu0.b32.cont [2/16] 0.0, 128
        %248 = vxpose.xlu0.b32.cont [3/16] 0.0, 128
        %249 = vxpose.xlu0.b32.cont [4/16] 0.0, 128
        %250 = vxpose.xlu0.b32.cont [5/16] 0.0, 128
        %251 = vxpose.xlu0.b32.cont [6/16] 0.0, 128
        %252 = vxpose.xlu0.b32.cont [7/16] 0.0, 128
        %253 = vxpose.xlu0.b32.cont [8/16] 0.0, 128
        %254 = vxpose.xlu0.b32.cont [9/16] 0.0, 128
        %255 = vxpose.xlu0.b32.cont [10/16] 0.0, 128
        %256 = vxpose.xlu0.b32.cont [11/16] 0.0, 128
        %257 = vxpose.xlu0.b32.cont [12/16] 0.0, 128
        %258 = vxpose.xlu0.b32.cont [13/16] 0.0, 128
        %259 = vxpose.xlu0.b32.cont [14/16] 0.0, 128
        %260 = vxpose.xlu0.b32.cont [15/16] 0.0, 128
        %261 = vxpose.xlu0.b32.end [16/16] 0.0, 128
        %v262 = vpop.trf.xlu0
        %v263 = vpop.trf.xlu0
        %v264 = vpop.trf.xlu0
        %v265 = vpop.trf.xlu0
        %v266 = vpop.trf.xlu0
        %v267 = vpop.trf.xlu0
        %v268 = vpop.trf.xlu0
        %v269 = vpop.trf.xlu0
        %v270 = vpop.trf.xlu0
        %v271 = vpop.trf.xlu0
        %v272 = vpop.trf.xlu0
        %v273 = vpop.trf.xlu0
        %v274 = vpop.trf.xlu0
        %v275 = vpop.trf.xlu0
        %v276 = vpop.trf.xlu0
        %v277 = vpop.trf.xlu0
        %s278 = scalar_lea.vmem [#allocation2], 32
        %279 = vst.msk [vmem:[%s278] sm:$0xff] %vm208, %v262
        %280 = vst.msk [vmem:[%s278 + $0x8] sm:$0xff] %vm208, %v263
        %281 = vxpose.xlu0.b32.start [1/16] %v175, 128
        %282 = vxpose.xlu0.b32.cont [2/16] 0.0, 128
        %283 = vxpose.xlu0.b32.cont [3/16] 0.0, 128
        %284 = vxpose.xlu0.b32.cont [4/16] 0.0, 128
        %285 = vxpose.xlu0.b32.cont [5/16] 0.0, 128
        %286 = vxpose.xlu0.b32.cont [6/16] 0.0, 128
        %287 = vxpose.xlu0.b32.cont [7/16] 0.0, 128
        %288 = vxpose.xlu0.b32.cont [8/16] 0.0, 128
        %289 = vxpose.xlu0.b32.cont [9/16] 0.0, 128
        %290 = vxpose.xlu0.b32.cont [10/16] 0.0, 128
        %291 = vxpose.xlu0.b32.cont [11/16] 0.0, 128
        %292 = vxpose.xlu0.b32.cont [12/16] 0.0, 128
        %293 = vxpose.xlu0.b32.cont [13/16] 0.0, 128
        %294 = vxpose.xlu0.b32.cont [14/16] 0.0, 128
        %295 = vxpose.xlu0.b32.cont [15/16] 0.0, 128
        %296 = vxpose.xlu0.b32.end [16/16] 0.0, 128
        %v297 = vpop.trf.xlu0
        %v298 = vpop.trf.xlu0
        %v299 = vpop.trf.xlu0
        %v300 = vpop.trf.xlu0
        %v301 = vpop.trf.xlu0
        %v302 = vpop.trf.xlu0
        %v303 = vpop.trf.xlu0
        %v304 = vpop.trf.xlu0
        %v305 = vpop.trf.xlu0
        %v306 = vpop.trf.xlu0
        %v307 = vpop.trf.xlu0
        %v308 = vpop.trf.xlu0
        %v309 = vpop.trf.xlu0
        %v310 = vpop.trf.xlu0
        %v311 = vpop.trf.xlu0
        %v312 = vpop.trf.xlu0
        %s313 = scalar_lea.vmem [#allocation2], 48
        %314 = vst.msk [vmem:[%s313] sm:$0xff] %vm208, %v297
        %315 = vst.msk [vmem:[%s313 + $0x8] sm:$0xff] %vm208, %v298
        %v316 = vld [vmem:[#allocation2] ss:$2 sm:$0xff]
        %s317 = scalar_lea.vmem [#allocation2], 16
        %v318 = vld [vmem:[%s317] ss:$2 sm:$0xff]
        %s319 = scalar_lea.vmem [#allocation2], 32
        %v320 = vld [vmem:[%s319] ss:$2 sm:$0xff]
        %s321 = scalar_lea.vmem [#allocation2], 48
        %v322 = vld [vmem:[%s321] ss:$2 sm:$0xff]
        %s323 = scalar_lea.vmem [#allocation2], 1
        %v324 = vld [vmem:[%s323] ss:$2 sm:$0xff]
        %s325 = scalar_lea.vmem [#allocation2], 17
        %v326 = vld [vmem:[%s325] ss:$2 sm:$0xff]
        %s327 = scalar_lea.vmem [#allocation2], 33
        %v328 = vld [vmem:[%s327] ss:$2 sm:$0xff]
        %s329 = scalar_lea.vmem [#allocation2], 49
        %v330 = vld [vmem:[%s329] ss:$2 sm:$0xff]
        %v331 = vmax.f32 %v316, %v324
        %v332 = vmax.f32 %v318, %v326
        %v333 = vmax.f32 %v320, %v328
        %v334 = vmax.f32 %v322, %v330
        %335 = vxpose.xlu0.b32.start [1/16] %v331, 128
        %336 = vxpose.xlu0.b32.cont [2/16] 0.0, 128
        %337 = vxpose.xlu0.b32.cont [3/16] 0.0, 128
        %338 = vxpose.xlu0.b32.cont [4/16] 0.0, 128
        %339 = vxpose.xlu0.b32.cont [5/16] 0.0, 128
        %340 = vxpose.xlu0.b32.cont [6/16] 0.0, 128
        %341 = vxpose.xlu0.b32.cont [7/16] 0.0, 128
        %342 = vxpose.xlu0.b32.cont [8/16] 0.0, 128
        %343 = vxpose.xlu0.b32.cont [9/16] 0.0, 128
        %344 = vxpose.xlu0.b32.cont [10/16] 0.0, 128
        %345 = vxpose.xlu0.b32.cont [11/16] 0.0, 128
        %346 = vxpose.xlu0.b32.cont [12/16] 0.0, 128
        %347 = vxpose.xlu0.b32.cont [13/16] 0.0, 128
        %348 = vxpose.xlu0.b32.cont [14/16] 0.0, 128
        %349 = vxpose.xlu0.b32.cont [15/16] 0.0, 128
        %350 = vxpose.xlu0.b32.end [16/16] 0.0, 128
        %v351 = vpop.trf.xlu0
        %v352 = vpop.trf.xlu0
        %v353 = vpop.trf.xlu0
        %v354 = vpop.trf.xlu0
        %v355 = vpop.trf.xlu0
        %v356 = vpop.trf.xlu0
        %v357 = vpop.trf.xlu0
        %v358 = vpop.trf.xlu0
        %v359 = vpop.trf.xlu0
        %v360 = vpop.trf.xlu0
        %v361 = vpop.trf.xlu0
        %v362 = vpop.trf.xlu0
        %v363 = vpop.trf.xlu0
        %v364 = vpop.trf.xlu0
        %v365 = vpop.trf.xlu0
        %v366 = vpop.trf.xlu0
        %367 = vst.msk [vmem:[%s153] sm:$0xff] %vm208, %v351
        %368 = vxpose.xlu0.b32.start [1/16] %v332, 128
        %369 = vxpose.xlu0.b32.cont [2/16] 0.0, 128
        %370 = vxpose.xlu0.b32.cont [3/16] 0.0, 128
        %371 = vxpose.xlu0.b32.cont [4/16] 0.0, 128
        %372 = vxpose.xlu0.b32.cont [5/16] 0.0, 128
        %373 = vxpose.xlu0.b32.cont [6/16] 0.0, 128
        %374 = vxpose.xlu0.b32.cont [7/16] 0.0, 128
        %375 = vxpose.xlu0.b32.cont [8/16] 0.0, 128
        %376 = vxpose.xlu0.b32.cont [9/16] 0.0, 128
        %377 = vxpose.xlu0.b32.cont [10/16] 0.0, 128
        %378 = vxpose.xlu0.b32.cont [11/16] 0.0, 128
        %379 = vxpose.xlu0.b32.cont [12/16] 0.0, 128
        %380 = vxpose.xlu0.b32.cont [13/16] 0.0, 128
        %381 = vxpose.xlu0.b32.cont [14/16] 0.0, 128
        %382 = vxpose.xlu0.b32.cont [15/16] 0.0, 128
        %383 = vxpose.xlu0.b32.end [16/16] 0.0, 128
        %v384 = vpop.trf.xlu0
        %v385 = vpop.trf.xlu0
        %v386 = vpop.trf.xlu0
        %v387 = vpop.trf.xlu0
        %v388 = vpop.trf.xlu0
        %v389 = vpop.trf.xlu0
        %v390 = vpop.trf.xlu0
        %v391 = vpop.trf.xlu0
        %v392 = vpop.trf.xlu0
        %v393 = vpop.trf.xlu0
        %v394 = vpop.trf.xlu0
        %v395 = vpop.trf.xlu0
        %v396 = vpop.trf.xlu0
        %v397 = vpop.trf.xlu0
        %v398 = vpop.trf.xlu0
        %v399 = vpop.trf.xlu0
        %s400 = scalar_lea.vmem %s153, 8 [#allocation6]
        %401 = vst.msk [vmem:[%s400] sm:$0xff] %vm208, %v384
        %402 = vxpose.xlu0.b32.start [1/16] %v333, 128
        %403 = vxpose.xlu0.b32.cont [2/16] 0.0, 128
        %404 = vxpose.xlu0.b32.cont [3/16] 0.0, 128
        %405 = vxpose.xlu0.b32.cont [4/16] 0.0, 128
        %406 = vxpose.xlu0.b32.cont [5/16] 0.0, 128
        %407 = vxpose.xlu0.b32.cont [6/16] 0.0, 128
        %408 = vxpose.xlu0.b32.cont [7/16] 0.0, 128
        %409 = vxpose.xlu0.b32.cont [8/16] 0.0, 128
        %410 = vxpose.xlu0.b32.cont [9/16] 0.0, 128
        %411 = vxpose.xlu0.b32.cont [10/16] 0.0, 128
        %412 = vxpose.xlu0.b32.cont [11/16] 0.0, 128
        %413 = vxpose.xlu0.b32.cont [12/16] 0.0, 128
        %414 = vxpose.xlu0.b32.cont [13/16] 0.0, 128
        %415 = vxpose.xlu0.b32.cont [14/16] 0.0, 128
        %416 = vxpose.xlu0.b32.cont [15/16] 0.0, 128
        %417 = vxpose.xlu0.b32.end [16/16] 0.0, 128
        %v418 = vpop.trf.xlu0
        %v419 = vpop.trf.xlu0
        %v420 = vpop.trf.xlu0
        %v421 = vpop.trf.xlu0
        %v422 = vpop.trf.xlu0
        %v423 = vpop.trf.xlu0
        %v424 = vpop.trf.xlu0
        %v425 = vpop.trf.xlu0
        %v426 = vpop.trf.xlu0
        %v427 = vpop.trf.xlu0
        %v428 = vpop.trf.xlu0
        %v429 = vpop.trf.xlu0
        %v430 = vpop.trf.xlu0
        %v431 = vpop.trf.xlu0
        %v432 = vpop.trf.xlu0
        %v433 = vpop.trf.xlu0
        %s434 = scalar_lea.vmem %s153, 16 [#allocation6]
        %435 = vst.msk [vmem:[%s434] sm:$0xff] %vm208, %v418
        %436 = vxpose.xlu0.b32.start [1/16] %v334, 128
        %437 = vxpose.xlu0.b32.cont [2/16] 0.0, 128
        %438 = vxpose.xlu0.b32.cont [3/16] 0.0, 128
        %439 = vxpose.xlu0.b32.cont [4/16] 0.0, 128
        %440 = vxpose.xlu0.b32.cont [5/16] 0.0, 128
        %441 = vxpose.xlu0.b32.cont [6/16] 0.0, 128
        %442 = vxpose.xlu0.b32.cont [7/16] 0.0, 128
        %443 = vxpose.xlu0.b32.cont [8/16] 0.0, 128
        %444 = vxpose.xlu0.b32.cont [9/16] 0.0, 128
        %445 = vxpose.xlu0.b32.cont [10/16] 0.0, 128
        %446 = vxpose.xlu0.b32.cont [11/16] 0.0, 128
        %447 = vxpose.xlu0.b32.cont [12/16] 0.0, 128
        %448 = vxpose.xlu0.b32.cont [13/16] 0.0, 128
        %449 = vxpose.xlu0.b32.cont [14/16] 0.0, 128
        %450 = vxpose.xlu0.b32.cont [15/16] 0.0, 128
        %451 = vxpose.xlu0.b32.end [16/16] 0.0, 128
        %v452 = vpop.trf.xlu0
        %v453 = vpop.trf.xlu0
        %v454 = vpop.trf.xlu0
        %v455 = vpop.trf.xlu0
        %v456 = vpop.trf.xlu0
        %v457 = vpop.trf.xlu0
        %v458 = vpop.trf.xlu0
        %v459 = vpop.trf.xlu0
        %v460 = vpop.trf.xlu0
        %v461 = vpop.trf.xlu0
        %v462 = vpop.trf.xlu0
        %v463 = vpop.trf.xlu0
        %v464 = vpop.trf.xlu0
        %v465 = vpop.trf.xlu0
        %v466 = vpop.trf.xlu0
        %v467 = vpop.trf.xlu0
        %s468 = scalar_lea.vmem %s153, 24 [#allocation6]
        %469 = vst.msk [vmem:[%s468] sm:$0xff] %vm208, %v452
        %s470 = sand.u32 %s68, 1
        %s471 = scalar_lea.sflag [#allocation5], %s470
        %s472 = sand.u32 %s68, 1
        %s473 = smul.addr %s472, 32
        %s474 = scalar_lea.vmem [#allocation6], %s473
        // Predicated region
        $region29: #{tpu_custom_call.1} parent=23 // pred_check
          %p475 = pneg %p78
        $region30: #{tpu_custom_call.1} parent=23 // pred_check_branch
          %477 = sbr.rel (%p475) target = $region32
        $region31: #{tpu_custom_call.1} parent=23 // pred_region
          %s478 = smul.u32 4, %s22
          %s480 = ssub.s32 512, 512
          %481 = vsyncadd %s471, %s480
          %s482 = sadd.s32 %s23, %s478
          %s483 = smul.addr %s482, 128
          %s484 = scalar_lea.hbm %s1, %s483
          %s485 = sshll.u32 %s474, 4
          %s486 = int_to_ptr.vmem [resolvable:$true] %s485
          %491 = dma.vmem_to_hbm [thread:$0]  %s486, 512, %s484, %s471, 128, 128, 8
        $region32: #{tpu_custom_call.1} parent=23 // pred_fallthru
          _
      $region24: #{tpu_custom_call.1} parent=5 // pred_fallthru
        _
      %p492 = scmp.le.s32.totalorder 2, %s13
      // Predicated region
      $region33: #{tpu_custom_call.1} parent=5 // pred_check
        %p493 = pneg %p492
      $region34: #{tpu_custom_call.1} parent=5 // pred_check_branch
        %495 = sbr.rel (%p493) target = $region36
      $region35: #{tpu_custom_call.1} parent=5 // pred_region
        %s496 = ssub.s32 %s13, 2
        // Predicated region
        $region37: #{tpu_custom_call.1} parent=35 // pred_check
          %p497 = pneg %p84
        $region38: #{tpu_custom_call.1} parent=35 // pred_check_branch
          %499 = sbr.rel (%p497) target = $region40
        $region39: #{tpu_custom_call.1} parent=35 // pred_region
          %s500 = sand.u32 %s69, 1
          %s501 = scalar_lea.sflag [#allocation5], %s500
          %s502 = sand.u32 %s69, 1
          %s503 = smul.addr %s502, 32
          %s504 = scalar_lea.vmem [#allocation6], %s503
          %505 = dma.done %s501, 512
        $region40: #{tpu_custom_call.1} parent=35 // pred_fallthru
          _
      $region36: #{tpu_custom_call.1} parent=5 // pred_fallthru
        _
    $region6: #{tpu_custom_call.1} parent=1 // loop_footer
      %s17 = sadd.s32 1, %s13
    $region7: #{tpu_custom_call.1} parent=1 // loop_footer_branch
      %12 = sbr.rel target = $region3
    $region8: #{tpu_custom_call.1} parent=1 // loop_exit
      _
    %506 = vsyncpa [#allocation4], 1
    %s507 = scalar_lea.sflag [#allocation4], 1
    %508 = vsyncpa %s507, 1
    %509 = vsyncpa [#allocation5], 1
    %s510 = scalar_lea.sflag [#allocation5], 1
    %511 = vsyncpa %s510, 1

</llo_original>
